<compile_context>
chip_gen: v5e
topology: v5e:2x2
jax: 0.10.0
libtpu: 0.0.40
codegen_flags: <defaults>
</compile_context>

<pallas_src>
import functools

import jax
import jax.numpy as jnp
from jax import lax
from jax.experimental import pallas as pl
from jax.experimental.pallas import tpu as pltpu


def _mdrnn_chunk_kernel(act_ref, lat_ref, w_a_t_ref, w_l_t_ref, w_hh_t_ref,
                        b_ref, w_gmm_t_ref, b_gmm_ref, out_ref,
                        gx_scr, h_chunk_scr, h_carry, c_carry,
                        *, chunk, bpad, hiddens, unroll):
    """One time-chunk of the LSTM recurrence + fused GMM head.

    act_ref:     (chunk*bpad, A)      bf16, time-major, batch-padded
    lat_ref:     (chunk*bpad, L)      bf16
    w_a_t_ref:   (A, 4H)              bf16   (W_ih action columns, transposed)
    w_l_t_ref:   (L, 4H)              bf16   (W_ih latent columns, transposed)
    w_hh_t_ref:  (H, 4H)              f32
    b_ref:       (1, 4H)              f32    (b_ih + b_hh folded)
    w_gmm_t_ref: (H, out_pad)         bf16   (out_dim zero-padded to mult 128)
    b_gmm_ref:   (1, out_pad)         f32
    out_ref:     (chunk*bpad, out_pad) f32
    gx_scr:      VMEM (chunk*bpad, 4H) f32   hoisted input-projection slab
    h_chunk_scr: VMEM (chunk*bpad, H)  f32   this chunk's hidden states
    h_carry:     VMEM (bpad, H)        f32   recurrent state carried across chunks
    c_carry:     VMEM (bpad, H)        f32
    """
    H = hiddens
    ci = pl.program_id(0)

    # Zero the recurrent state at the first chunk only (persists afterwards).
    @pl.when(ci == 0)
    def _():
        h_carry[...] = jnp.zeros_like(h_carry)
        c_carry[...] = jnp.zeros_like(c_carry)

    # (1) Hoisted input projection over the whole chunk: two bf16 MXU matmuls
    #     with f32 accumulation (replaces the per-step x @ W_ih and the HBM
    #     concat of actions/latents).
    gx_scr[...] = (
        jnp.dot(act_ref[...], w_a_t_ref[...],
                preferred_element_type=jnp.float32)
        + jnp.dot(lat_ref[...], w_l_t_ref[...],
                  preferred_element_type=jnp.float32)
        + b_ref[...])

    w_hh_t = w_hh_t_ref[...]  # (H, 4H) f32, stays resident in vregs/VMEM

    # (2) Recurrence over this chunk: h/c carried as values (vregs); only the
    #     tiny h @ W_hh matmul + f32 gate math on the per-step critical path.
    def step(t, carry):
        h, c = carry
        row = pl.multiple_of(t * bpad, bpad)
        gates = gx_scr[pl.ds(row, bpad), :] + jnp.dot(
            h, w_hh_t, preferred_element_type=jnp.float32)       # (bpad, 4H)

        # Two full-tile transcendental passes, then static lane slices
        # (PyTorch gate order [i, f, g, o]).
        sig = jax.nn.sigmoid(gates)
        th = jnp.tanh(gates)
        i_g = sig[:, 0 * H:1 * H]
        f_g = sig[:, 1 * H:2 * H]
        g_g = th[:, 2 * H:3 * H]
        o_g = sig[:, 3 * H:4 * H]

        c_new = f_g * c + i_g * g_g
        h_new = o_g * jnp.tanh(c_new)
        h_chunk_scr[pl.ds(row, bpad), :] = h_new
        return (h_new, c_new)

    h_last, c_last = lax.fori_loop(
        0, chunk, step, (h_carry[...], c_carry[...]), unroll=unroll)
    h_carry[...] = h_last
    c_carry[...] = c_last

    # (3) GMM head fused per chunk: one lane-dense bf16 MXU matmul
    #     (out_pad % 128 == 0 -> unmasked vst), f32 accumulation + bias.
    out_ref[...] = (
        jnp.dot(h_chunk_scr[...].astype(jnp.bfloat16), w_gmm_t_ref[...],
                preferred_element_type=jnp.float32)
        + b_gmm_ref[...])


def mdrnn_train_forward(actions, latents, params, *, latents_dim, actions_dim,
                        hiddens, gaussians, t_chunk=64):
    """Pallas implementation of MDRNN_Train.forward.

    Returns (means, sigmas, logpi, ds) with the same shapes/semantics as the
    PyTorch module.
    """
    seq_len, bs, _ = actions.shape
    out_dim = (2 * latents_dim + 1) * gaussians + 1

    # --- alignment / chunking (padding sliced off below) ---
    bpad = max(8, ((bs + 7) // 8) * 8)              # f32 sublane multiple
    out_pad = ((out_dim + 127) // 128) * 128        # lane-dense output
    chunk = max(1, min(t_chunk, seq_len))
    chunk += chunk % 2                              # rows_c % 16 == 0 for bf16 tiles
    num_chunks = -(-seq_len // chunk)
    seq_pad = num_chunks * chunk
    rows_c = chunk * bpad

    # Batch-pad + flatten each stream to 2-D; NO concat round trip in HBM.
    def stage(x, d):
        x = x.astype(jnp.bfloat16)
        if bpad != bs or seq_pad != seq_len:
            x = jnp.pad(x, ((0, seq_pad - seq_len), (0, bpad - bs), (0, 0)))
        return x.reshape(seq_pad * bpad, d)

    act2d = stage(actions, actions_dim)             # (seq_pad*bpad, A) bf16
    lat2d = stage(latents, latents_dim)             # (seq_pad*bpad, L) bf16

    # Split W_ih into action / latent column blocks; pre-transpose everything
    # so the kernel does plain (M, K) @ (K, N) matmuls.
    w_ih = params["w_ih"]                                        # (4H, A+L)
    w_a_t = w_ih[:, :actions_dim].T.astype(jnp.bfloat16)         # (A, 4H)
    w_l_t = w_ih[:, actions_dim:].T.astype(jnp.bfloat16)         # (L, 4H)
    w_hh_t = params["w_hh"].T.astype(jnp.float32)                # (H, 4H) f32
    b = (params["b_ih"] + params["b_hh"]).reshape(1, 4 * hiddens).astype(
        jnp.float32)                                             # fold b_ih+b_hh
    w_gmm_t = params["w_gmm"].T.astype(jnp.bfloat16)             # (H, out_dim)
    b_gmm = params["b_gmm"].reshape(1, out_dim).astype(jnp.float32)
    if out_pad != out_dim:
        w_gmm_t = jnp.pad(w_gmm_t, ((0, 0), (0, out_pad - out_dim)))
        b_gmm = jnp.pad(b_gmm, ((0, 0), (0, out_pad - out_dim)))

    kernel = functools.partial(_mdrnn_chunk_kernel, chunk=chunk, bpad=bpad,
                               hiddens=hiddens, unroll=min(chunk, 8))

    gmm_pad = pl.pallas_call(
        kernel,
        out_shape=jax.ShapeDtypeStruct((seq_pad * bpad, out_pad), jnp.float32),
        grid_spec=pltpu.PrefetchScalarGridSpec(
            num_scalar_prefetch=0,
            grid=(num_chunks,),                     # time chunks, sequential
            in_specs=[
                pl.BlockSpec((rows_c, actions_dim), lambda i: (i, 0)),
                pl.BlockSpec((rows_c, latents_dim), lambda i: (i, 0)),
                # Grid-invariant weights/biases: index_map constant so they
                # are DMA'd once and stay resident across chunks.
                pl.BlockSpec((actions_dim, 4 * hiddens), lambda i: (0, 0)),
                pl.BlockSpec((latents_dim, 4 * hiddens), lambda i: (0, 0)),
                pl.BlockSpec((hiddens, 4 * hiddens), lambda i: (0, 0)),
                pl.BlockSpec((1, 4 * hiddens), lambda i: (0, 0)),
                pl.BlockSpec((hiddens, out_pad), lambda i: (0, 0)),
                pl.BlockSpec((1, out_pad), lambda i: (0, 0)),
            ],
            out_specs=pl.BlockSpec((rows_c, out_pad), lambda i: (i, 0)),
            scratch_shapes=[
                pltpu.VMEM((rows_c, 4 * hiddens), jnp.float32),  # gates_x slab
                pltpu.VMEM((rows_c, hiddens), jnp.float32),      # chunk hiddens
                pltpu.VMEM((bpad, hiddens), jnp.float32),        # h carry
                pltpu.VMEM((bpad, hiddens), jnp.float32),        # c carry
            ],
        ),
        compiler_params=pltpu.CompilerParams(
            dimension_semantics=("arbitrary",),     # recurrent across chunks
            vmem_limit_bytes=48 * 1024 * 1024),     # fits v5e/v6e/v7x budgets
    )(act2d, lat2d, w_a_t, w_l_t, w_hh_t, b, w_gmm_t, b_gmm)

    # strip alignment padding
    gmm_outs = gmm_pad.reshape(seq_pad, bpad, out_pad)[:seq_len, :bs, :out_dim]

    # --- glue: split GMM head outputs (cheap, plain JAX) ---
    partition = gaussians * latents_dim
    means = gmm_outs[:, :, :partition].reshape(
        seq_len, bs, gaussians, latents_dim)
    log_sigmas = gmm_outs[:, :, partition:2 * partition].reshape(
        seq_len, bs, gaussians, latents_dim)
    sigmas = jnp.exp(log_sigmas)
    pi = gmm_outs[:, :, 2 * partition:2 * partition + gaussians]
    logpi = jax.nn.log_softmax(pi, axis=-1)
    ds = gmm_outs[:, :, -1]
    return means, sigmas, logpi, ds


def _reference_forward(actions, latents, params, *, latents_dim, actions_dim,
                       hiddens, gaussians):
    """Pure-JAX f32 reference (mirrors the PyTorch module) for validation."""
    H = hiddens
    ins = jnp.concatenate([actions, latents], axis=-1).astype(jnp.float32)
    seq_len, bs, _ = ins.shape
    w_ih, w_hh = params["w_ih"], params["w_hh"]
    b = params["b_ih"] + params["b_hh"]

    def step(carry, x):
        h, c = carry
        gates = (x @ w_ih.T + h @ w_hh.T + b)
        i = jax.nn.sigmoid(gates[:, 0 * H:1 * H])
        f = jax.nn.sigmoid(gates[:, 1 * H:2 * H])
        g = jnp.tanh(gates[:, 2 * H:3 * H])
        o = jax.nn.sigmoid(gates[:, 3 * H:4 * H])
        c = f * c + i * g
        h = o * jnp.tanh(c)
        return (h, c), h

    init = (jnp.zeros((bs, H), jnp.float32), jnp.zeros((bs, H), jnp.float32))
    _, hs = lax.scan(step, init, ins)
    gmm_outs = hs @ params["w_gmm"].T + params["b_gmm"]

    partition = gaussians * latents_dim
    means = gmm_outs[:, :, :partition].reshape(
        seq_len, bs, gaussians, latents_dim)
    sigmas = jnp.exp(gmm_outs[:, :, partition:2 * partition].reshape(
        seq_len, bs, gaussians, latents_dim))
    logpi = jax.nn.log_softmax(
        gmm_outs[:, :, 2 * partition:2 * partition + gaussians], axis=-1)
    ds = gmm_outs[:, :, -1]
    return means, sigmas, logpi, ds


def init_params(key, *, latents_dim, actions_dim, hiddens, gaussians):
    """Deterministic parameter init (PyTorch-style uniform fan-in scaling)."""
    in_dim = latents_dim + actions_dim
    out_dim = (2 * latents_dim + 1) * gaussians + 1
    k_lstm = 1.0 / jnp.sqrt(hiddens)
    k_lin = 1.0 / jnp.sqrt(hiddens)
    ks = jax.random.split(key, 6)
    u = lambda k, shape, s: jax.random.uniform(
        k, shape, jnp.float32, minval=-s, maxval=s)
    return {
        "w_ih": u(ks[0], (4 * hiddens, in_dim), k_lstm),
        "w_hh": u(ks[1], (4 * hiddens, hiddens), k_lstm),
        "b_ih": u(ks[2], (4 * hiddens,), k_lstm),
        "b_hh": u(ks[3], (4 * hiddens,), k_lstm),
        "w_gmm": u(ks[4], (out_dim, hiddens), k_lin),
        "b_gmm": u(ks[5], (out_dim,), k_lin),
    }


if __name__ == "__main__":
    # Small shapes consistent with the module's forward().
    LATENTS, ACTIONS, HIDDENS, GAUSSIANS = 8, 4, 32, 5
    SEQ_LEN, BSIZE = 8, 2

    key = jax.random.PRNGKey(0)
    k_act, k_lat, k_par = jax.random.split(key, 3)

    actions = jax.random.normal(k_act, (SEQ_LEN, BSIZE, ACTIONS), jnp.float32)
    latents = jax.random.normal(k_lat, (SEQ_LEN, BSIZE, LATENTS), jnp.float32)
    params = init_params(k_par, latents_dim=LATENTS, actions_dim=ACTIONS,
                         hiddens=HIDDENS, gaussians=GAUSSIANS)

    # t_chunk=4 -> 2 time chunks, exercising the carried h/c state path.
    means, sigmas, logpi, ds = mdrnn_train_forward(
        actions, latents, params,
        latents_dim=LATENTS, actions_dim=ACTIONS,
        hiddens=HIDDENS, gaussians=GAUSSIANS, t_chunk=4)
    jax.block_until_ready((means, sigmas, logpi, ds))

    assert means.shape == (SEQ_LEN, BSIZE, GAUSSIANS, LATENTS)
    assert sigmas.shape == (SEQ_LEN, BSIZE, GAUSSIANS, LATENTS)
    assert logpi.shape == (SEQ_LEN, BSIZE, GAUSSIANS)
    assert ds.shape == (SEQ_LEN, BSIZE)

    # Numerical sanity check against a pure-JAX f32 reference.  The hoisted
    # matmuls use bf16 inputs (f32 accumulation), so allow ~1e-2-level drift.
    r_means, r_sigmas, r_logpi, r_ds = _reference_forward(
        actions, latents, params,
        latents_dim=LATENTS, actions_dim=ACTIONS,
        hiddens=HIDDENS, gaussians=GAUSSIANS)
    import numpy as np
    np.testing.assert_allclose(np.asarray(means), np.asarray(r_means),
                               rtol=2e-2, atol=2e-2)
    np.testing.assert_allclose(np.asarray(sigmas), np.asarray(r_sigmas),
                               rtol=2e-2, atol=2e-2)
    np.testing.assert_allclose(np.asarray(logpi), np.asarray(r_logpi),
                               rtol=2e-2, atol=2e-2)
    np.testing.assert_allclose(np.asarray(ds), np.asarray(r_ds),
                               rtol=2e-2, atol=2e-2)

    print("KERNEL_OK")
</pallas_src>

<mosaic_0001>
module attributes {stable_mosaic.version = 11 : i64} {
  func.func @_mdrnn_chunk_kernel(%arg0: i32, %arg1: memref<32x4xbf16, #tpu.memory_space<vmem>>, %arg2: memref<32x8xbf16, #tpu.memory_space<vmem>>, %arg3: memref<4x128xbf16, #tpu.memory_space<vmem>>, %arg4: memref<8x128xbf16, #tpu.memory_space<vmem>>, %arg5: memref<32x128xf32, #tpu.memory_space<vmem>>, %arg6: memref<1x128xf32, #tpu.memory_space<vmem>>, %arg7: memref<32x128xbf16, #tpu.memory_space<vmem>>, %arg8: memref<1x128xf32, #tpu.memory_space<vmem>>, %arg9: memref<32x128xf32, #tpu.memory_space<vmem>>, %arg10: memref<32x128xf32, #tpu.memory_space<vmem>>, %arg11: memref<32x32xf32, #tpu.memory_space<vmem>>, %arg12: memref<8x32xf32, #tpu.memory_space<vmem>>, %arg13: memref<8x32xf32, #tpu.memory_space<vmem>>) attributes {dimension_semantics = [#tpu.dimension_semantics<arbitrary>], iteration_bounds = array<i64: 2>, scalar_prefetch = 0 : i64, scratch_operands = 4 : i64, tpu.core_type = #tpu.core_type<tc>, window_params = [{transform_indices = @transform_0, window_bounds = array<i64: 32, 4>}, {transform_indices = @transform_1, window_bounds = array<i64: 32, 8>}, {pipeline_mode = #tpu.pipeline_mode<synchronous>, transform_indices = @transform_2, window_bounds = array<i64: 4, 128>}, {pipeline_mode = #tpu.pipeline_mode<synchronous>, transform_indices = @transform_3, window_bounds = array<i64: 8, 128>}, {pipeline_mode = #tpu.pipeline_mode<synchronous>, transform_indices = @transform_4, window_bounds = array<i64: 32, 128>}, {pipeline_mode = #tpu.pipeline_mode<synchronous>, transform_indices = @transform_5, window_bounds = array<i64: 1, 128>}, {pipeline_mode = #tpu.pipeline_mode<synchronous>, transform_indices = @transform_6, window_bounds = array<i64: 32, 128>}, {pipeline_mode = #tpu.pipeline_mode<synchronous>, transform_indices = @transform_7, window_bounds = array<i64: 1, 128>}, {transform_indices = @transform_8, window_bounds = array<i64: 32, 128>}]} {
    %c0_i32 = arith.constant 0 : i32
    %0 = arith.cmpi eq, %arg0, %c0_i32 : i32
    %1 = arith.extui %0 : i1 to i32
    %c0_i32_0 = arith.constant 0 : i32
    %2 = arith.cmpi ne, %1, %c0_i32_0 : i32
    scf.if %2 {
      %cst_52 = arith.constant 0.000000e+00 : f32
      %119 = vector.broadcast %cst_52 : f32 to vector<8x32xf32>
      %c0_53 = arith.constant 0 : index
      %c0_54 = arith.constant 0 : index
      %120 = vector.load %arg12[%c0_53, %c0_54] : memref<8x32xf32, #tpu.memory_space<vmem>>, vector<8x32xf32>
      tpu.vector_store %arg12[%c0_53, %c0_54], %119 {strides = array<i32>} : memref<8x32xf32, #tpu.memory_space<vmem>>, vector<8x32xf32>,
      %cst_55 = arith.constant 0.000000e+00 : f32
      %121 = vector.broadcast %cst_55 : f32 to vector<8x32xf32>
      %c0_56 = arith.constant 0 : index
      %c0_57 = arith.constant 0 : index
      %122 = vector.load %arg13[%c0_56, %c0_57] : memref<8x32xf32, #tpu.memory_space<vmem>>, vector<8x32xf32>
      tpu.vector_store %arg13[%c0_56, %c0_57], %121 {strides = array<i32>} : memref<8x32xf32, #tpu.memory_space<vmem>>, vector<8x32xf32>,
    } else {
    }
    %c0 = arith.constant 0 : index
    %c0_1 = arith.constant 0 : index
    %3 = vector.load %arg1[%c0, %c0_1] : memref<32x4xbf16, #tpu.memory_space<vmem>>, vector<32x4xbf16>
    %c0_2 = arith.constant 0 : index
    %c0_3 = arith.constant 0 : index
    %4 = vector.load %arg3[%c0_2, %c0_3] : memref<4x128xbf16, #tpu.memory_space<vmem>>, vector<4x128xbf16>
    %cst = arith.constant dense<0.000000e+00> : vector<32x128xf32>
    %5 = tpu.matmul %3, %4, %cst {dimension_numbers = #tpu.dot_dimension_numbers<[1], [0], [0], [1], [0, 0, 1, 1], [], []>} : vector<32x4xbf16>, vector<4x128xbf16>, vector<32x128xf32> -> vector<32x128xf32>
    %c0_4 = arith.constant 0 : index
    %c0_5 = arith.constant 0 : index
    %6 = vector.load %arg2[%c0_4, %c0_5] : memref<32x8xbf16, #tpu.memory_space<vmem>>, vector<32x8xbf16>
    %c0_6 = arith.constant 0 : index
    %c0_7 = arith.constant 0 : index
    %7 = vector.load %arg4[%c0_6, %c0_7] : memref<8x128xbf16, #tpu.memory_space<vmem>>, vector<8x128xbf16>
    %cst_8 = arith.constant dense<0.000000e+00> : vector<32x128xf32>
    %8 = tpu.matmul %6, %7, %cst_8 {dimension_numbers = #tpu.dot_dimension_numbers<[1], [0], [0], [1], [0, 0, 1, 1], [], []>} : vector<32x8xbf16>, vector<8x128xbf16>, vector<32x128xf32> -> vector<32x128xf32>
    %9 = arith.addf %5, %8 : vector<32x128xf32>
    %c0_9 = arith.constant 0 : index
    %c0_10 = arith.constant 0 : index
    %10 = vector.load %arg6[%c0_9, %c0_10] : memref<1x128xf32, #tpu.memory_space<vmem>>, vector<1x128xf32>
    %11 = vector.broadcast %10 : vector<1x128xf32> to vector<32x128xf32>
    %12 = arith.addf %9, %11 : vector<32x128xf32>
    %c0_11 = arith.constant 0 : index
    %c0_12 = arith.constant 0 : index
    %13 = vector.load %arg10[%c0_11, %c0_12] : memref<32x128xf32, #tpu.memory_space<vmem>>, vector<32x128xf32>
    tpu.vector_store %arg10[%c0_11, %c0_12], %12 {strides = array<i32>} : memref<32x128xf32, #tpu.memory_space<vmem>>, vector<32x128xf32>,
    %c0_13 = arith.constant 0 : index
    %c0_14 = arith.constant 0 : index
    %14 = vector.load %arg5[%c0_13, %c0_14] : memref<32x128xf32, #tpu.memory_space<vmem>>, vector<32x128xf32>
    %c0_15 = arith.constant 0 : index
    %c0_16 = arith.constant 0 : index
    %15 = vector.load %arg12[%c0_15, %c0_16] : memref<8x32xf32, #tpu.memory_space<vmem>>, vector<8x32xf32>
    %c0_17 = arith.constant 0 : index
    %c0_18 = arith.constant 0 : index
    %16 = vector.load %arg13[%c0_17, %c0_18] : memref<8x32xf32, #tpu.memory_space<vmem>>, vector<8x32xf32>
    %c0_i32_19 = arith.constant 0 : i32
    %c8_i32 = arith.constant 8 : i32
    %17 = arith.muli %c0_i32_19, %c8_i32 : i32
    %18 = tpu.assume_multiple %17, 8 : i32
    %19 = arith.index_cast %18 : i32 to index
    %c0_20 = arith.constant 0 : index
    %20 = vector.load %arg10[%19, %c0_20] : memref<32x128xf32, #tpu.memory_space<vmem>>, vector<8x128xf32>
    %cst_21 = arith.constant dense<0.000000e+00> : vector<8x128xf32>
    %21 = tpu.matmul %15, %14, %cst_21 {dimension_numbers = #tpu.dot_dimension_numbers<[1], [0], [0], [1], [0, 0, 1, 1], [], []>} : vector<8x32xf32>, vector<32x128xf32>, vector<8x128xf32> -> vector<8x128xf32>
    %22 = arith.addf %20, %21 : vector<8x128xf32>
    %23 = arith.negf %22 : vector<8x128xf32>
    %24 = math.exp %23 : vector<8x128xf32>
    %cst_22 = arith.constant 1.000000e+00 : f32
    %25 = vector.broadcast %cst_22 : f32 to vector<8x128xf32>
    %26 = arith.addf %25, %24 : vector<8x128xf32>
    %27 = arith.divf %25, %26 : vector<8x128xf32>
    %28 = math.tanh %22 : vector<8x128xf32>
    %29 = vector.extract_strided_slice %27 {offsets = [0, 0], sizes = [8, 32], strides = [1, 1]} : vector<8x128xf32> to vector<8x32xf32>
    %30 = vector.extract_strided_slice %27 {offsets = [0, 32], sizes = [8, 32], strides = [1, 1]} : vector<8x128xf32> to vector<8x32xf32>
    %31 = vector.extract_strided_slice %28 {offsets = [0, 64], sizes = [8, 32], strides = [1, 1]} : vector<8x128xf32> to vector<8x32xf32>
    %32 = vector.extract_strided_slice %27 {offsets = [0, 96], sizes = [8, 32], strides = [1, 1]} : vector<8x128xf32> to vector<8x32xf32>
    %33 = arith.mulf %30, %16 : vector<8x32xf32>
    %34 = arith.mulf %29, %31 : vector<8x32xf32>
    %35 = arith.addf %33, %34 : vector<8x32xf32>
    %36 = math.tanh %35 : vector<8x32xf32>
    %37 = arith.mulf %32, %36 : vector<8x32xf32>
    %38 = arith.index_cast %18 : i32 to index
    %c0_23 = arith.constant 0 : index
    %39 = vector.load %arg11[%38, %c0_23] : memref<32x32xf32, #tpu.memory_space<vmem>>, vector<8x32xf32>
    tpu.vector_store %arg11[%38, %c0_23], %37 {strides = array<i32>} : memref<32x32xf32, #tpu.memory_space<vmem>>, vector<8x32xf32>,
    %c1_i32 = arith.constant 1 : i32
    %c8_i32_24 = arith.constant 8 : i32
    %40 = arith.muli %c1_i32, %c8_i32_24 : i32
    %41 = tpu.assume_multiple %40, 8 : i32
    %42 = arith.index_cast %41 : i32 to index
    %c0_25 = arith.constant 0 : index
    %43 = vector.load %arg10[%42, %c0_25] : memref<32x128xf32, #tpu.memory_space<vmem>>, vector<8x128xf32>
    %cst_26 = arith.constant dense<0.000000e+00> : vector<8x128xf32>
    %44 = tpu.matmul %37, %14, %cst_26 {dimension_numbers = #tpu.dot_dimension_numbers<[1], [0], [0], [1], [0, 0, 1, 1], [], []>} : vector<8x32xf32>, vector<32x128xf32>, vector<8x128xf32> -> vector<8x128xf32>
    %45 = arith.addf %43, %44 : vector<8x128xf32>
    %46 = arith.negf %45 : vector<8x128xf32>
    %47 = math.exp %46 : vector<8x128xf32>
    %cst_27 = arith.constant 1.000000e+00 : f32
    %48 = vector.broadcast %cst_27 : f32 to vector<8x128xf32>
    %49 = arith.addf %48, %47 : vector<8x128xf32>
    %50 = arith.divf %48, %49 : vector<8x128xf32>
    %51 = math.tanh %45 : vector<8x128xf32>
    %52 = vector.extract_strided_slice %50 {offsets = [0, 0], sizes = [8, 32], strides = [1, 1]} : vector<8x128xf32> to vector<8x32xf32>
    %53 = vector.extract_strided_slice %50 {offsets = [0, 32], sizes = [8, 32], strides = [1, 1]} : vector<8x128xf32> to vector<8x32xf32>
    %54 = vector.extract_strided_slice %51 {offsets = [0, 64], sizes = [8, 32], strides = [1, 1]} : vector<8x128xf32> to vector<8x32xf32>
    %55 = vector.extract_strided_slice %50 {offsets = [0, 96], sizes = [8, 32], strides = [1, 1]} : vector<8x128xf32> to vector<8x32xf32>
    %56 = arith.mulf %53, %35 : vector<8x32xf32>
    %57 = arith.mulf %52, %54 : vector<8x32xf32>
    %58 = arith.addf %56, %57 : vector<8x32xf32>
    %59 = math.tanh %58 : vector<8x32xf32>
    %60 = arith.mulf %55, %59 : vector<8x32xf32>
    %61 = arith.index_cast %41 : i32 to index
    %c0_28 = arith.constant 0 : index
    %62 = vector.load %arg11[%61, %c0_28] : memref<32x32xf32, #tpu.memory_space<vmem>>, vector<8x32xf32>
    tpu.vector_store %arg11[%61, %c0_28], %60 {strides = array<i32>} : memref<32x32xf32, #tpu.memory_space<vmem>>, vector<8x32xf32>,
    %c2_i32 = arith.constant 2 : i32
    %c8_i32_29 = arith.constant 8 : i32
    %63 = arith.muli %c2_i32, %c8_i32_29 : i32
    %64 = tpu.assume_multiple %63, 8 : i32
    %65 = arith.index_cast %64 : i32 to index
    %c0_30 = arith.constant 0 : index
    %66 = vector.load %arg10[%65, %c0_30] : memref<32x128xf32, #tpu.memory_space<vmem>>, vector<8x128xf32>
    %cst_31 = arith.constant dense<0.000000e+00> : vector<8x128xf32>
    %67 = tpu.matmul %60, %14, %cst_31 {dimension_numbers = #tpu.dot_dimension_numbers<[1], [0], [0], [1], [0, 0, 1, 1], [], []>} : vector<8x32xf32>, vector<32x128xf32>, vector<8x128xf32> -> vector<8x128xf32>
    %68 = arith.addf %66, %67 : vector<8x128xf32>
    %69 = arith.negf %68 : vector<8x128xf32>
    %70 = math.exp %69 : vector<8x128xf32>
    %cst_32 = arith.constant 1.000000e+00 : f32
    %71 = vector.broadcast %cst_32 : f32 to vector<8x128xf32>
    %72 = arith.addf %71, %70 : vector<8x128xf32>
    %73 = arith.divf %71, %72 : vector<8x128xf32>
    %74 = math.tanh %68 : vector<8x128xf32>
    %75 = vector.extract_strided_slice %73 {offsets = [0, 0], sizes = [8, 32], strides = [1, 1]} : vector<8x128xf32> to vector<8x32xf32>
    %76 = vector.extract_strided_slice %73 {offsets = [0, 32], sizes = [8, 32], strides = [1, 1]} : vector<8x128xf32> to vector<8x32xf32>
    %77 = vector.extract_strided_slice %74 {offsets = [0, 64], sizes = [8, 32], strides = [1, 1]} : vector<8x128xf32> to vector<8x32xf32>
    %78 = vector.extract_strided_slice %73 {offsets = [0, 96], sizes = [8, 32], strides = [1, 1]} : vector<8x128xf32> to vector<8x32xf32>
    %79 = arith.mulf %76, %58 : vector<8x32xf32>
    %80 = arith.mulf %75, %77 : vector<8x32xf32>
    %81 = arith.addf %79, %80 : vector<8x32xf32>
    %82 = math.tanh %81 : vector<8x32xf32>
    %83 = arith.mulf %78, %82 : vector<8x32xf32>
    %84 = arith.index_cast %64 : i32 to index
    %c0_33 = arith.constant 0 : index
    %85 = vector.load %arg11[%84, %c0_33] : memref<32x32xf32, #tpu.memory_space<vmem>>, vector<8x32xf32>
    tpu.vector_store %arg11[%84, %c0_33], %83 {strides = array<i32>} : memref<32x32xf32, #tpu.memory_space<vmem>>, vector<8x32xf32>,
    %c3_i32 = arith.constant 3 : i32
    %c8_i32_34 = arith.constant 8 : i32
    %86 = arith.muli %c3_i32, %c8_i32_34 : i32
    %87 = tpu.assume_multiple %86, 8 : i32
    %88 = arith.index_cast %87 : i32 to index
    %c0_35 = arith.constant 0 : index
    %89 = vector.load %arg10[%88, %c0_35] : memref<32x128xf32, #tpu.memory_space<vmem>>, vector<8x128xf32>
    %cst_36 = arith.constant dense<0.000000e+00> : vector<8x128xf32>
    %90 = tpu.matmul %83, %14, %cst_36 {dimension_numbers = #tpu.dot_dimension_numbers<[1], [0], [0], [1], [0, 0, 1, 1], [], []>} : vector<8x32xf32>, vector<32x128xf32>, vector<8x128xf32> -> vector<8x128xf32>
    %91 = arith.addf %89, %90 : vector<8x128xf32>
    %92 = arith.negf %91 : vector<8x128xf32>
    %93 = math.exp %92 : vector<8x128xf32>
    %cst_37 = arith.constant 1.000000e+00 : f32
    %94 = vector.broadcast %cst_37 : f32 to vector<8x128xf32>
    %95 = arith.addf %94, %93 : vector<8x128xf32>
    %96 = arith.divf %94, %95 : vector<8x128xf32>
    %97 = math.tanh %91 : vector<8x128xf32>
    %98 = vector.extract_strided_slice %96 {offsets = [0, 0], sizes = [8, 32], strides = [1, 1]} : vector<8x128xf32> to vector<8x32xf32>
    %99 = vector.extract_strided_slice %96 {offsets = [0, 32], sizes = [8, 32], strides = [1, 1]} : vector<8x128xf32> to vector<8x32xf32>
    %100 = vector.extract_strided_slice %97 {offsets = [0, 64], sizes = [8, 32], strides = [1, 1]} : vector<8x128xf32> to vector<8x32xf32>
    %101 = vector.extract_strided_slice %96 {offsets = [0, 96], sizes = [8, 32], strides = [1, 1]} : vector<8x128xf32> to vector<8x32xf32>
    %102 = arith.mulf %99, %81 : vector<8x32xf32>
    %103 = arith.mulf %98, %100 : vector<8x32xf32>
    %104 = arith.addf %102, %103 : vector<8x32xf32>
    %105 = math.tanh %104 : vector<8x32xf32>
    %106 = arith.mulf %101, %105 : vector<8x32xf32>
    %107 = arith.index_cast %87 : i32 to index
    %c0_38 = arith.constant 0 : index
    %108 = vector.load %arg11[%107, %c0_38] : memref<32x32xf32, #tpu.memory_space<vmem>>, vector<8x32xf32>
    tpu.vector_store %arg11[%107, %c0_38], %106 {strides = array<i32>} : memref<32x32xf32, #tpu.memory_space<vmem>>, vector<8x32xf32>,
    %c4_i32 = arith.constant 4 : i32
    %c0_39 = arith.constant 0 : index
    %c0_40 = arith.constant 0 : index
    %109 = vector.load %arg12[%c0_39, %c0_40] : memref<8x32xf32, #tpu.memory_space<vmem>>, vector<8x32xf32>
    tpu.vector_store %arg12[%c0_39, %c0_40], %106 {strides = array<i32>} : memref<8x32xf32, #tpu.memory_space<vmem>>, vector<8x32xf32>,
    %c0_41 = arith.constant 0 : index
    %c0_42 = arith.constant 0 : index
    %110 = vector.load %arg13[%c0_41, %c0_42] : memref<8x32xf32, #tpu.memory_space<vmem>>, vector<8x32xf32>
    tpu.vector_store %arg13[%c0_41, %c0_42], %104 {strides = array<i32>} : memref<8x32xf32, #tpu.memory_space<vmem>>, vector<8x32xf32>,
    %c0_43 = arith.constant 0 : index
    %c0_44 = arith.constant 0 : index
    %111 = vector.load %arg11[%c0_43, %c0_44] : memref<32x32xf32, #tpu.memory_space<vmem>>, vector<32x32xf32>
    %112 = arith.truncf %111 : vector<32x32xf32> to vector<32x32xbf16>
    %c0_45 = arith.constant 0 : index
    %c0_46 = arith.constant 0 : index
    %113 = vector.load %arg7[%c0_45, %c0_46] : memref<32x128xbf16, #tpu.memory_space<vmem>>, vector<32x128xbf16>
    %cst_47 = arith.constant dense<0.000000e+00> : vector<32x128xf32>
    %114 = tpu.matmul %112, %113, %cst_47 {dimension_numbers = #tpu.dot_dimension_numbers<[1], [0], [0], [1], [0, 0, 1, 1], [], []>} : vector<32x32xbf16>, vector<32x128xbf16>, vector<32x128xf32> -> vector<32x128xf32>
    %c0_48 = arith.constant 0 : index
    %c0_49 = arith.constant 0 : index
    %115 = vector.load %arg8[%c0_48, %c0_49] : memref<1x128xf32, #tpu.memory_space<vmem>>, vector<1x128xf32>
    %116 = vector.broadcast %115 : vector<1x128xf32> to vector<32x128xf32>
    %117 = arith.addf %114, %116 : vector<32x128xf32>
    %c0_50 = arith.constant 0 : index
    %c0_51 = arith.constant 0 : index
    %118 = vector.load %arg9[%c0_50, %c0_51] : memref<32x128xf32, #tpu.memory_space<vmem>>, vector<32x128xf32>
    tpu.vector_store %arg9[%c0_50, %c0_51], %117 {strides = array<i32>} : memref<32x128xf32, #tpu.memory_space<vmem>>, vector<32x128xf32>,
    return
  }
  func.func @transform_0(%arg0: i32) -> (i32, i32) {
    %c0_i32 = arith.constant 0 : i32
    %c0_i32_0 = arith.constant 0 : i32
    return %arg0, %c0_i32 : i32, i32
  }
  func.func @transform_1(%arg0: i32) -> (i32, i32) {
    %c0_i32 = arith.constant 0 : i32
    %c0_i32_0 = arith.constant 0 : i32
    return %arg0, %c0_i32 : i32, i32
  }
  func.func @transform_2(%arg0: i32) -> (i32, i32) {
    %c0_i32 = arith.constant 0 : i32
    %c0_i32_0 = arith.constant 0 : i32
    %c0_i32_1 = arith.constant 0 : i32
    return %c0_i32, %c0_i32_0 : i32, i32
  }
  func.func @transform_3(%arg0: i32) -> (i32, i32) {
    %c0_i32 = arith.constant 0 : i32
    %c0_i32_0 = arith.constant 0 : i32
    %c0_i32_1 = arith.constant 0 : i32
    return %c0_i32, %c0_i32_0 : i32, i32
  }
  func.func @transform_4(%arg0: i32) -> (i32, i32) {
    %c0_i32 = arith.constant 0 : i32
    %c0_i32_0 = arith.constant 0 : i32
    %c0_i32_1 = arith.constant 0 : i32
    return %c0_i32, %c0_i32_0 : i32, i32
  }
  func.func @transform_5(%arg0: i32) -> (i32, i32) {
    %c0_i32 = arith.constant 0 : i32
    %c0_i32_0 = arith.constant 0 : i32
    %c0_i32_1 = arith.constant 0 : i32
    return %c0_i32, %c0_i32_0 : i32, i32
  }
  func.func @transform_6(%arg0: i32) -> (i32, i32) {
    %c0_i32 = arith.constant 0 : i32
    %c0_i32_0 = arith.constant 0 : i32
    %c0_i32_1 = arith.constant 0 : i32
    return %c0_i32, %c0_i32_0 : i32, i32
  }
  func.func @transform_7(%arg0: i32) -> (i32, i32) {
    %c0_i32 = arith.constant 0 : i32
    %c0_i32_0 = arith.constant 0 : i32
    %c0_i32_1 = arith.constant 0 : i32
    return %c0_i32, %c0_i32_0 : i32, i32
  }
  func.func @transform_8(%arg0: i32) -> (i32, i32) {
    %c0_i32 = arith.constant 0 : i32
    %c0_i32_0 = arith.constant 0 : i32
    return %arg0, %c0_i32 : i32, i32
  }
}

</mosaic_0001>

<llo_original>
// kernel: tpu_custom_call.1
$region0: #{tpu_custom_call.1}
  #allocation0 [shape = 'u32[]', space=smem, size = 0x4, offset = 0x4, fixed_abs, tag = 'smem constant byte address 0x4 - core index']
  #allocation1 [shape = 'u32[72,128]{1,0:T(1,128)}', space=vmem, size = 0x9000, scoped, tag = 'internal scratch']
  #allocation2 [shape = 'f32[32,128]{1,0:T(8,128)}', space=vmem, size = 0x4000, scoped, tag = 'scratch operand']
  #allocation3 [shape = 'f32[32,32]{1,0:T(8,128)}', space=vmem, size = 0x4000, scoped, tag = 'scratch operand']
  #allocation4 [shape = 'f32[8,32]{1,0:T(8,128)}', space=vmem, size = 0x1000, scoped, tag = 'scratch operand']
  #allocation5 [shape = 'f32[8,32]{1,0:T(8,128)}', space=vmem, size = 0x1000, scoped, tag = 'scratch operand']
  %s0 = inlined_call_operand.vmem [shape: bf16[64,4], index: 0, kind: input, shape index: {}]
  %s1 = inlined_call_operand.vmem [shape: bf16[64,8], index: 1, kind: input, shape index: {}]
  %s2 = inlined_call_operand.vmem [shape: bf16[4,128], index: 2, kind: input, shape index: {}]
  %s3 = inlined_call_operand.vmem [shape: bf16[8,128], index: 3, kind: input, shape index: {}]
  %s4 = inlined_call_operand.vmem [shape: f32[32,128], index: 4, kind: input, shape index: {}]
  %s5 = inlined_call_operand.vmem [shape: f32[1,128], index: 5, kind: input, shape index: {}]
  %s6 = inlined_call_operand.vmem [shape: bf16[32,128], index: 6, kind: input, shape index: {}]
  %s7 = inlined_call_operand.vmem [shape: f32[1,128], index: 7, kind: input, shape index: {}]
  %s8 = inlined_call_operand.hbm [shape: f32[64,128], index: 8, kind: output, shape index: {}]
  %s9 = sld [smem:[#allocation0]]
  $region69: #{tpu_custom_call.1} parent=0
    _
  %s11 = ssub.s32 1, %s9
  %s12 = scalar_select 0, %s11, %s9
  $region1: #{tpu_custom_call.1} parent=0
    #allocation6 [shape = 'u8[32768]{0}', space=vmem, size = 0x8000, scoped, tag = 'output window, operand 0']
    #allocation7 [shape = 's32[2]{0}', space=sflag, size = 0x8, scoped, tag = 'scoped memory for tpu_custom_call.1']
    %13 = vsyncpa [#allocation7], 0
    %s14 = scalar_lea.sflag [#allocation7], 1
    %15 = vsyncpa %s14, 0
    loop: start=0, step=1, limit=4
    $region2: #{tpu_custom_call.1} parent=1 // loop_pre_header
      _
    $region3: #{tpu_custom_call.1} parent=1 // loop_header
      %s17 = sphi 0, %s21
      %p18 = scmp.ge.s32.totalorder %s17, 4
      %s27 = sphi 0, %s29
      %s30 = sphi 0, %s27
      %s31 = sphi 0, %s30
      %s47 = sphi 0, %s31
      %s53 = sphi 0, %s55
      %s56 = sphi 0, %s53
      %s57 = sphi 0, %s56
      %s73 = sphi 0, %s57
      %s77 = sphi 0, %s77
      %s79 = sphi 0, %s77
      %s80 = sphi 0, %s79
      %s94 = sphi 0, %s80
      %s98 = sphi 0, %s98
      %s100 = sphi 0, %s98
      %s101 = sphi 0, %s100
      %s115 = sphi 0, %s101
      %s119 = sphi 0, %s119
      %s121 = sphi 0, %s119
      %s122 = sphi 0, %s121
      %s136 = sphi 0, %s122
      %s140 = sphi 0, %s140
      %s142 = sphi 0, %s140
      %s143 = sphi 0, %s142
      %s157 = sphi 0, %s143
      %s161 = sphi 0, %s161
      %s163 = sphi 0, %s161
      %s164 = sphi 0, %s163
      %s178 = sphi 0, %s164
      %s182 = sphi 0, %s182
      %s184 = sphi 0, %s182
      %s185 = sphi 0, %s184
      %s199 = sphi 0, %s185
      %s205 = sphi 0, %s207
      %s208 = sphi 0, %s205
      %s209 = sphi 0, %s208
      %s225 = sphi 0, %s209
    $region4: #{tpu_custom_call.1} parent=1 // loop_header_branch
      %20 = sbr.rel (%p18) target = $region8
    $region5: #{tpu_custom_call.1} parent=1 // loop_body
      %s22 = ssub.s32 %s17, 1
      %s23 = ssub.s32 %s17, 2
      %s24 = sadd.s32 %s17, 1
      %s25 = ssub.s32 %s17, %s24
      %p26 = scmp.eq.s32.totalorder %s25, 0
      %s28 = sadd.s32 %s27, 1
      %s29 = scalar_select %p26, %s27, %s28
      %p32 = pneg %p26
      %p33 = scmp.eq.s32.totalorder %s17, 1
      %p34 = por %p32, %p33
      %p35 = scmp.ne.s32.totalorder %s27, %s30
      %p36 = scmp.eq.s32.totalorder %s17, 0
      %p37 = por %p35, %p36
      %p38 = scmp.ne.s32.totalorder %s27, %s30
      %p39 = scmp.eq.s32.totalorder %s22, 1
      %p40 = por %p38, %p39
      %p41 = scmp.ne.s32.totalorder %s30, %s31
      %p42 = scmp.eq.s32.totalorder %s22, 0
      %p43 = por %p41, %p42
      %p44 = scmp.ne.s32.totalorder %s30, %s31
      %p45 = scmp.eq.s32.totalorder %s23, 1
      %p46 = por %p44, %p45
      %p48 = scmp.ne.s32.totalorder %s31, %s47
      %p49 = scmp.eq.s32.totalorder %s23, 0
      %p50 = por %p48, %p49
      %s51 = ssub.s32 %s17, %s24
      %p52 = scmp.eq.s32.totalorder %s51, 0
      %s54 = sadd.s32 %s53, 1
      %s55 = scalar_select %p52, %s53, %s54
      %p58 = pneg %p52
      %p59 = scmp.eq.s32.totalorder %s17, 1
      %p60 = por %p58, %p59
      %p61 = scmp.ne.s32.totalorder %s53, %s56
      %p62 = scmp.eq.s32.totalorder %s17, 0
      %p63 = por %p61, %p62
      %p64 = scmp.ne.s32.totalorder %s53, %s56
      %p65 = scmp.eq.s32.totalorder %s22, 1
      %p66 = por %p64, %p65
      %p67 = scmp.ne.s32.totalorder %s56, %s57
      %p68 = scmp.eq.s32.totalorder %s22, 0
      %p69 = por %p67, %p68
      %p70 = scmp.ne.s32.totalorder %s56, %s57
      %p71 = scmp.eq.s32.totalorder %s23, 1
      %p72 = por %p70, %p71
      %p74 = scmp.ne.s32.totalorder %s57, %s73
      %p75 = scmp.eq.s32.totalorder %s23, 0
      %p76 = por %p74, %p75
      %s78 = sadd.s32 %s77, 1
      %p81 = scmp.eq.s32.totalorder %s17, 1
      %p82 = scmp.ne.s32.totalorder %s77, %s79
      %p83 = scmp.eq.s32.totalorder %s17, 0
      %p84 = por %p82, %p83
      %p85 = scmp.ne.s32.totalorder %s77, %s79
      %p86 = scmp.eq.s32.totalorder %s22, 1
      %p87 = por %p85, %p86
      %p88 = scmp.ne.s32.totalorder %s79, %s80
      %p89 = scmp.eq.s32.totalorder %s22, 0
      %p90 = por %p88, %p89
      %p91 = scmp.ne.s32.totalorder %s79, %s80
      %p92 = scmp.eq.s32.totalorder %s23, 1
      %p93 = por %p91, %p92
      %p95 = scmp.ne.s32.totalorder %s80, %s94
      %p96 = scmp.eq.s32.totalorder %s23, 0
      %p97 = por %p95, %p96
      %s99 = sadd.s32 %s98, 1
      %p102 = scmp.eq.s32.totalorder %s17, 1
      %p103 = scmp.ne.s32.totalorder %s98, %s100
      %p104 = scmp.eq.s32.totalorder %s17, 0
      %p105 = por %p103, %p104
      %p106 = scmp.ne.s32.totalorder %s98, %s100
      %p107 = scmp.eq.s32.totalorder %s22, 1
      %p108 = por %p106, %p107
      %p109 = scmp.ne.s32.totalorder %s100, %s101
      %p110 = scmp.eq.s32.totalorder %s22, 0
      %p111 = por %p109, %p110
      %p112 = scmp.ne.s32.totalorder %s100, %s101
      %p113 = scmp.eq.s32.totalorder %s23, 1
      %p114 = por %p112, %p113
      %p116 = scmp.ne.s32.totalorder %s101, %s115
      %p117 = scmp.eq.s32.totalorder %s23, 0
      %p118 = por %p116, %p117
      %s120 = sadd.s32 %s119, 1
      %p123 = scmp.eq.s32.totalorder %s17, 1
      %p124 = scmp.ne.s32.totalorder %s119, %s121
      %p125 = scmp.eq.s32.totalorder %s17, 0
      %p126 = por %p124, %p125
      %p127 = scmp.ne.s32.totalorder %s119, %s121
      %p128 = scmp.eq.s32.totalorder %s22, 1
      %p129 = por %p127, %p128
      %p130 = scmp.ne.s32.totalorder %s121, %s122
      %p131 = scmp.eq.s32.totalorder %s22, 0
      %p132 = por %p130, %p131
      %p133 = scmp.ne.s32.totalorder %s121, %s122
      %p134 = scmp.eq.s32.totalorder %s23, 1
      %p135 = por %p133, %p134
      %p137 = scmp.ne.s32.totalorder %s122, %s136
      %p138 = scmp.eq.s32.totalorder %s23, 0
      %p139 = por %p137, %p138
      %s141 = sadd.s32 %s140, 1
      %p144 = scmp.eq.s32.totalorder %s17, 1
      %p145 = scmp.ne.s32.totalorder %s140, %s142
      %p146 = scmp.eq.s32.totalorder %s17, 0
      %p147 = por %p145, %p146
      %p148 = scmp.ne.s32.totalorder %s140, %s142
      %p149 = scmp.eq.s32.totalorder %s22, 1
      %p150 = por %p148, %p149
      %p151 = scmp.ne.s32.totalorder %s142, %s143
      %p152 = scmp.eq.s32.totalorder %s22, 0
      %p153 = por %p151, %p152
      %p154 = scmp.ne.s32.totalorder %s142, %s143
      %p155 = scmp.eq.s32.totalorder %s23, 1
      %p156 = por %p154, %p155
      %p158 = scmp.ne.s32.totalorder %s143, %s157
      %p159 = scmp.eq.s32.totalorder %s23, 0
      %p160 = por %p158, %p159
      %s162 = sadd.s32 %s161, 1
      %p165 = scmp.eq.s32.totalorder %s17, 1
      %p166 = scmp.ne.s32.totalorder %s161, %s163
      %p167 = scmp.eq.s32.totalorder %s17, 0
      %p168 = por %p166, %p167
      %p169 = scmp.ne.s32.totalorder %s161, %s163
      %p170 = scmp.eq.s32.totalorder %s22, 1
      %p171 = por %p169, %p170
      %p172 = scmp.ne.s32.totalorder %s163, %s164
      %p173 = scmp.eq.s32.totalorder %s22, 0
      %p174 = por %p172, %p173
      %p175 = scmp.ne.s32.totalorder %s163, %s164
      %p176 = scmp.eq.s32.totalorder %s23, 1
      %p177 = por %p175, %p176
      %p179 = scmp.ne.s32.totalorder %s164, %s178
      %p180 = scmp.eq.s32.totalorder %s23, 0
      %p181 = por %p179, %p180
      %s183 = sadd.s32 %s182, 1
      %p186 = scmp.eq.s32.totalorder %s17, 1
      %p187 = scmp.ne.s32.totalorder %s182, %s184
      %p188 = scmp.eq.s32.totalorder %s17, 0
      %p189 = por %p187, %p188
      %p190 = scmp.ne.s32.totalorder %s182, %s184
      %p191 = scmp.eq.s32.totalorder %s22, 1
      %p192 = por %p190, %p191
      %p193 = scmp.ne.s32.totalorder %s184, %s185
      %p194 = scmp.eq.s32.totalorder %s22, 0
      %p195 = por %p193, %p194
      %p196 = scmp.ne.s32.totalorder %s184, %s185
      %p197 = scmp.eq.s32.totalorder %s23, 1
      %p198 = por %p196, %p197
      %p200 = scmp.ne.s32.totalorder %s185, %s199
      %p201 = scmp.eq.s32.totalorder %s23, 0
      %p202 = por %p200, %p201
      %s203 = ssub.s32 %s17, %s24
      %p204 = scmp.eq.s32.totalorder %s203, 0
      %s206 = sadd.s32 %s205, 1
      %s207 = scalar_select %p204, %s205, %s206
      %p210 = pneg %p204
      %p211 = scmp.eq.s32.totalorder %s17, 1
      %p212 = por %p210, %p211
      %p213 = scmp.ne.s32.totalorder %s205, %s208
      %p214 = scmp.eq.s32.totalorder %s17, 0
      %p215 = por %p213, %p214
      %p216 = scmp.ne.s32.totalorder %s205, %s208
      %p217 = scmp.eq.s32.totalorder %s22, 1
      %p218 = por %p216, %p217
      %p219 = scmp.ne.s32.totalorder %s208, %s209
      %p220 = scmp.eq.s32.totalorder %s22, 0
      %p221 = por %p219, %p220
      %p222 = scmp.ne.s32.totalorder %s208, %s209
      %p223 = scmp.eq.s32.totalorder %s23, 1
      %p224 = por %p222, %p223
      %p226 = scmp.ne.s32.totalorder %s209, %s225
      %p227 = scmp.eq.s32.totalorder %s23, 0
      %p228 = por %p226, %p227
      %p229 = scmp.le.s32.totalorder 1, %s17
      %p230 = scmp.lt.s32.totalorder %s17, 3
      %p231 = pnand %p229, %p230
      %p232 = pneg %p231
      // Predicated region
      $region9: #{tpu_custom_call.1} parent=5 // pred_check
        _
      $region10: #{tpu_custom_call.1} parent=5 // pred_check_branch
        %234 = sbr.rel (%p231) target = $region12
      $region11: #{tpu_custom_call.1} parent=5 // pred_region
        %s235 = ssub.s32 %s17, 1
        // Predicated region
        $region13: #{tpu_custom_call.1} parent=11 // pred_check
          %p236 = pneg %p90
        $region14: #{tpu_custom_call.1} parent=11 // pred_check_branch
          %238 = sbr.rel (%p236) target = $region16
        $region15: #{tpu_custom_call.1} parent=11 // pred_region
          _
        $region16: #{tpu_custom_call.1} parent=11 // pred_fallthru
          _
        // Predicated region
        $region17: #{tpu_custom_call.1} parent=11 // pred_check
          %p239 = pneg %p111
        $region18: #{tpu_custom_call.1} parent=11 // pred_check_branch
          %241 = sbr.rel (%p239) target = $region20
        $region19: #{tpu_custom_call.1} parent=11 // pred_region
          _
        $region20: #{tpu_custom_call.1} parent=11 // pred_fallthru
          _
        // Predicated region
        $region21: #{tpu_custom_call.1} parent=11 // pred_check
          %p242 = pneg %p132
        $region22: #{tpu_custom_call.1} parent=11 // pred_check_branch
          %244 = sbr.rel (%p242) target = $region24
        $region23: #{tpu_custom_call.1} parent=11 // pred_region
          _
        $region24: #{tpu_custom_call.1} parent=11 // pred_fallthru
          _
        // Predicated region
        $region25: #{tpu_custom_call.1} parent=11 // pred_check
          %p245 = pneg %p153
        $region26: #{tpu_custom_call.1} parent=11 // pred_check_branch
          %247 = sbr.rel (%p245) target = $region28
        $region27: #{tpu_custom_call.1} parent=11 // pred_region
          _
        $region28: #{tpu_custom_call.1} parent=11 // pred_fallthru
          _
        // Predicated region
        $region29: #{tpu_custom_call.1} parent=11 // pred_check
          %p248 = pneg %p174
        $region30: #{tpu_custom_call.1} parent=11 // pred_check_branch
          %250 = sbr.rel (%p248) target = $region32
        $region31: #{tpu_custom_call.1} parent=11 // pred_region
          _
        $region32: #{tpu_custom_call.1} parent=11 // pred_fallthru
          _
        // Predicated region
        $region33: #{tpu_custom_call.1} parent=11 // pred_check
          %p251 = pneg %p195
        $region34: #{tpu_custom_call.1} parent=11 // pred_check_branch
          %253 = sbr.rel (%p251) target = $region36
        $region35: #{tpu_custom_call.1} parent=11 // pred_region
          _
        $region36: #{tpu_custom_call.1} parent=11 // pred_fallthru
          _
      $region12: #{tpu_custom_call.1} parent=5 // pred_fallthru
        _
      %p254 = scmp.lt.s32.totalorder %s17, 2
      // Predicated region
      $region37: #{tpu_custom_call.1} parent=5 // pred_check
        %p255 = pneg %p254
      $region38: #{tpu_custom_call.1} parent=5 // pred_check_branch
        %257 = sbr.rel (%p255) target = $region40
      $region39: #{tpu_custom_call.1} parent=5 // pred_region
        // Predicated region
        $region41: #{tpu_custom_call.1} parent=39 // pred_check
          %p258 = pneg %p37
        $region42: #{tpu_custom_call.1} parent=39 // pred_check_branch
          %260 = sbr.rel (%p258) target = $region44
        $region43: #{tpu_custom_call.1} parent=39 // pred_region
          %s261 = smul.u32 4, %s17
          %p262 = scmp.lt.s32.totalorder %s261, 7
          %s263 = scalar_select %p262, %s261, 7
          %s264 = smul.addr %s263, 4
          %s265 = scalar_lea.vmem %s0, %s264
          %s266 = smul.u32 4, %s17
        $region44: #{tpu_custom_call.1} parent=39 // pred_fallthru
          _
        // Predicated region
        $region45: #{tpu_custom_call.1} parent=39 // pred_check
          %p267 = pneg %p63
        $region46: #{tpu_custom_call.1} parent=39 // pred_check_branch
          %269 = sbr.rel (%p267) target = $region48
        $region47: #{tpu_custom_call.1} parent=39 // pred_region
          %s270 = smul.u32 4, %s17
          %p271 = scmp.lt.s32.totalorder %s270, 7
          %s272 = scalar_select %p271, %s270, 7
          %s273 = smul.addr %s272, 4
          %s274 = scalar_lea.vmem %s1, %s273
          %s275 = smul.u32 4, %s17
        $region48: #{tpu_custom_call.1} parent=39 // pred_fallthru
          _
      $region40: #{tpu_custom_call.1} parent=5 // pred_fallthru
        _
      %p276 = scmp.le.s32.totalorder 1, %s17
      %p277 = scmp.lt.s32.totalorder %s17, 3
      %p278 = pnand %p276, %p277
      %p279 = pneg %p278
      // Predicated region
      $region49: #{tpu_custom_call.1} parent=5 // pred_check
        _
      $region50: #{tpu_custom_call.1} parent=5 // pred_check_branch
        %281 = sbr.rel (%p278) target = $region52
      $region51: #{tpu_custom_call.1} parent=5 // pred_region
        %s282 = ssub.s32 %s17, 1
        %s283 = smul.u32 4, %s22
        %p284 = scmp.lt.s32.totalorder %s283, 7
        %s285 = scalar_select %p284, %s283, 7
        %s286 = smul.addr %s285, 4
        %s287 = scalar_lea.vmem %s0, %s286
        %p288 = pneg %p43
        %p289 = pneg %p40
        %s290 = smul.u32 4, %s22
        %p291 = scmp.lt.s32.totalorder %s290, 7
        %s292 = scalar_select %p291, %s290, 7
        %s293 = smul.addr %s292, 4
        %s294 = scalar_lea.vmem %s1, %s293
        %p295 = pneg %p69
        %p296 = pneg %p66
        %p297 = pneg %p90
        %p298 = pneg %p87
        %p299 = pneg %p111
        %p300 = pneg %p108
        %p301 = pneg %p132
        %p302 = pneg %p129
        %p303 = pneg %p153
        %p304 = pneg %p150
        %p305 = pneg %p174
        %p306 = pneg %p171
        %p307 = pneg %p195
        %p308 = pneg %p192
        %p309 = pneg %p221
        %p310 = pneg %p218
        %s311 = sand.u32 %s208, 1
        %s312 = scalar_lea.sflag [#allocation7], %s311
        %s313 = sand.u32 %s208, 1
        %s314 = smul.addr %s313, 32
        %s315 = scalar_lea.vmem [#allocation6], %s314
        %s316 = smul.u32 4, %s22
        %p317 = scmp.lt.s32.totalorder %s316, 7
        %s318 = scalar_select %p317, %s316, 7
        %s319 = smul.addr %s318, 4
        %s320 = scalar_lea.vmem %s0, %s319
        %s321 = smul.u32 4, %s22
        %s322 = smul.u32 4, %s22
        %p323 = scmp.lt.s32.totalorder %s322, 7
        %s324 = scalar_select %p323, %s322, 7
        %s325 = smul.addr %s324, 4
        %s326 = scalar_lea.vmem %s1, %s325
        %s327 = smul.u32 4, %s22
        %s328 = smul.u32 4, %s22
        %p330 = scmp.eq.s32.totalorder %s22, 0
        // Predicated region
        $region53: #{tpu_custom_call.1} parent=51 // pred_check
          %p331 = pneg %p330
        $region54: #{tpu_custom_call.1} parent=51 // pred_check_branch
          %333 = sbr.rel (%p331) target = $region56
        $region55: #{tpu_custom_call.1} parent=51 // pred_region
          %vm334 = vcmask 261120
          %335 = vst.msk [vmem:[#allocation4] sm:$0xff] %vm334, 0.0
          %336 = vst.msk [vmem:[#allocation5] sm:$0xff] %vm334, 0.0
        $region56: #{tpu_custom_call.1} parent=51 // pred_fallthru
          _
        %v337 = vld [vmem:[%s320] sm:$0xf]
        %v338 = vld [vmem:[%s320 + $0x4] sm:$0xf]
        %v339 = vld [vmem:[%s320 + $0x8] sm:$0xf]
        %v340 = vld [vmem:[%s320 + $0xc] sm:$0xf]
        %v341 = vld [vmem:[%s2] sm:$0x3]
        %v342 = vld [vmem:[%s326] sm:$0xf]
        %v343 = vld [vmem:[%s326 + $0x4] sm:$0xf]
        %v344 = vld [vmem:[%s326 + $0x8] sm:$0xf]
        %v345 = vld [vmem:[%s326 + $0xc] sm:$0xf]
        %v346 = vld [vmem:[%s3] sm:$0xf]
        %v351 = vunpack.c.l.b16 %v342
        %v352 = vunpack.c.l.b16 %v343
        %v353 = vunpack.c.l.b16 %v344
        %v354 = vunpack.c.l.b16 %v345
        %v355 = vpack.c.b16 %v352, %v351
        %v356 = vpack.c.b16 %v354, %v353
        %vm357 = vcmask 64512
        %v359 = vsel %vm357, %v355, 0
        %v362 = vsel %vm357, %v356, 0
        %vm364 = vcmask 1043456
        %v366 = vsel %vm364, %v346, 0
        %368 = vmatpush.bf16.msra.mxu0 0
        %369 = vmatpush.bf16.msra.mxu0 0
        %370 = vmatpush.bf16.msra.mxu0 0
        %371 = vmatpush.bf16.msra.mxu0 0
        %372 = vmatpush.bf16.msra.mxu0 0
        %373 = vmatpush.bf16.msra.mxu0 0
        %374 = vmatpush.bf16.msra.mxu0 0
        %375 = vmatpush.bf16.msra.mxu0 %v366
        %376 = vmatmul.bf16.gmra.mxu0 %v359
        %v377 = vpop.f32.mrf.mxu0
        %v378 = vadd.f32 0.0, %v377
        %v379 = vpop.f32.mrf.mxu0
        %v380 = vadd.f32 0.0, %v379
        %381 = vmatmul.bf16.gmra.mxu0 %v362
        %v382 = vpop.f32.mrf.mxu0
        %v383 = vadd.f32 0.0, %v382
        %v384 = vpop.f32.mrf.mxu0
        %v385 = vadd.f32 0.0, %v384
        %386 = vdwg.mxu0
        %v391 = vunpack.c.l.b16 %v337
        %v392 = vunpack.c.l.b16 %v338
        %v393 = vunpack.c.l.b16 %v339
        %v394 = vunpack.c.l.b16 %v340
        %v395 = vpack.c.b16 %v392, %v391
        %v396 = vpack.c.b16 %v394, %v393
        %vm397 = vcmask 31744
        %v399 = vsel %vm397, %v395, 0
        %v402 = vsel %vm397, %v396, 0
        %vm404 = vcmask 1041408
        %v406 = vsel %vm404, %v341, 0
        %408 = vmatpush.bf16.msra.mxu0 0
        %409 = vmatpush.bf16.msra.mxu0 0
        %410 = vmatpush.bf16.msra.mxu0 0
        %411 = vmatpush.bf16.msra.mxu0 0
        %412 = vmatpush.bf16.msra.mxu0 0
        %413 = vmatpush.bf16.msra.mxu0 0
        %414 = vmatpush.bf16.msra.mxu0 0
        %415 = vmatpush.bf16.msra.mxu0 %v406
        %416 = vmatmul.bf16.gmra.mxu0 %v399
        %v417 = vpop.f32.mrf.mxu0
        %v418 = vadd.f32 %v378, %v417
        %v419 = vpop.f32.mrf.mxu0
        %v420 = vadd.f32 %v380, %v419
        %421 = vmatmul.bf16.gmra.mxu0 %v402
        %v422 = vpop.f32.mrf.mxu0
        %v423 = vadd.f32 %v383, %v422
        %v424 = vpop.f32.mrf.mxu0
        %v425 = vadd.f32 %v385, %v424
        %426 = vdwg.mxu0
        %v427 = vld [vmem:[%s5] sm:$0x1]
        %v429 = vperm.slane %v427, 0
        %v431 = vadd.f32 %v418, %v429
        %v432 = vadd.f32 %v420, %v429
        %v433 = vadd.f32 %v423, %v429
        %v434 = vadd.f32 %v425, %v429
        %435 = vst [vmem:[#allocation2] sm:$0xff] %v431
        %436 = vst [vmem:[#allocation2 + $0x8] sm:$0xff] %v432
        %437 = vst [vmem:[#allocation2 + $0x10] sm:$0xff] %v433
        %438 = vst [vmem:[#allocation2 + $0x18] sm:$0xff] %v434
        %v439 = vld [vmem:[%s4] sm:$0xff]
        %v440 = vld [vmem:[%s4 + $0x8] sm:$0xff]
        %v441 = vld [vmem:[%s4 + $0x10] sm:$0xff]
        %v442 = vld [vmem:[%s4 + $0x18] sm:$0xff]
        %v443 = vld [vmem:[#allocation4] sm:$0xff]
        %v444 = vld [vmem:[#allocation5] sm:$0xff]
        %v445 = vld [vmem:[#allocation2] sm:$0xff]
        %vm446 = vcmask 261120
        %v448 = vsel %vm446, %v443, 0
        %450 = vmatpush.msra.mxu0 0.0
        %451 = vmatpush.msra.mxu0 0.0
        %452 = vmatpush.msra.mxu0 0.0
        %453 = vmatpush.msra.mxu0 0.0
        %454 = vmatpush.msra.mxu0 0.0
        %455 = vmatpush.msra.mxu0 0.0
        %456 = vmatpush.msra.mxu0 0.0
        %457 = vmatpush.msra.mxu0 0.0
        %458 = vmatpush.msra.mxu0 0.0
        %459 = vmatpush.msra.mxu0 0.0
        %460 = vmatpush.msra.mxu0 0.0
        %461 = vmatpush.msra.mxu0 0.0
        %462 = vmatpush.msra.mxu0 %v442
        %463 = vmatpush.msra.mxu0 %v441
        %464 = vmatpush.msra.mxu0 %v440
        %465 = vmatpush.msra.mxu0 %v439
        %466 = vmatmul.f32.gmra.mxu0 %v448
        %v467 = vpop.f32.mrf.mxu0
        %v468 = vadd.f32 0.0, %v467
        %469 = vdwg.mxu0
        %v470 = vadd.f32 %v445, %v468
        %v471 = vxor.u32 %v470, 2147483648
        %v472 = vmul.f32 %v471, 1.442695
        %v473 = vpow.pop %v472
        %v474 = vadd.f32 %v473, 1.0
        %v475 = vrcp.pop %v474
        %v476 = vmul.f32 %v474, %v475
        %v477 = vsub.f32 1.0, %v476
        %v478 = vmul.f32 %v475, %v477
        %v479 = vadd.f32 %v475, %v478
        %vm480 = vweird.f32 %v474
        %vm481 = vweird.f32 %v475
        %vm482 = vmor %vm480, %vm481
        %v483 = vsel %vm482, %v475, %v479
        %v484 = vand.u32 2147483647, %v474
        %vm485 = vcmp.eq.f32.partialorder %v484, 8.507059e+37
        %v486 = vand.u32 %v474, 2147483648
        %v487 = vor.u32 1.1754944e-38, %v486
        %v488 = vsel %vm485, %v487, %v483
        %v489 = vmul.f32 1.0, %v488
        %v490 = vtanh.pop %v470
        %492 = vrot.lane.b32.xlu0 %v444, 32
        %v493 = vpop.permute.xlu0 %492
        %v495 = vmul.f32 %v489, %v493
        %497 = vrot.lane.b32.xlu0 %v490, 64
        %v498 = vpop.permute.xlu0 %497
        %v500 = vmul.f32 %v489, %v498
        %502 = vrot.lane.b32.xlu0 %v500, 32
        %v503 = vpop.permute.xlu0 %502
        %v505 = vadd.f32 %v495, %v503
        %v506 = vtanh.pop %v505
        %508 = vrot.lane.b32.xlu0 %v506, 64
        %v509 = vpop.permute.xlu0 %508
        %v511 = vmul.f32 %v489, %v509
        %513 = vrot.lane.b32.xlu0 %v511, 32
        %v514 = vpop.permute.xlu0 %513
        %516 = vst.msk [vmem:[#allocation3] sm:$0xff] %vm446, %v514
        %s517 = scalar_lea.vmem [#allocation2], 8
        %v518 = vld [vmem:[%s517] sm:$0xff]
        %v519 = vsel %vm446, %v514, 0
        %521 = vmatpush.msra.mxu0 0.0
        %522 = vmatpush.msra.mxu0 0.0
        %523 = vmatpush.msra.mxu0 0.0
        %524 = vmatpush.msra.mxu0 0.0
        %525 = vmatpush.msra.mxu0 0.0
        %526 = vmatpush.msra.mxu0 0.0
        %527 = vmatpush.msra.mxu0 0.0
        %528 = vmatpush.msra.mxu0 0.0
        %529 = vmatpush.msra.mxu0 0.0
        %530 = vmatpush.msra.mxu0 0.0
        %531 = vmatpush.msra.mxu0 0.0
        %532 = vmatpush.msra.mxu0 0.0
        %533 = vmatpush.msra.mxu0 %v442
        %534 = vmatpush.msra.mxu0 %v441
        %535 = vmatpush.msra.mxu0 %v440
        %536 = vmatpush.msra.mxu0 %v439
        %537 = vmatmul.f32.gmra.mxu0 %v519
        %v538 = vpop.f32.mrf.mxu0
        %v539 = vadd.f32 0.0, %v538
        %540 = vdwg.mxu0
        %v541 = vadd.f32 %v518, %v539
        %v542 = vxor.u32 %v541, 2147483648
        %v543 = vmul.f32 %v542, 1.442695
        %v544 = vpow.pop %v543
        %v545 = vadd.f32 %v544, 1.0
        %v546 = vrcp.pop %v545
        %v547 = vmul.f32 %v545, %v546
        %v548 = vsub.f32 1.0, %v547
        %v549 = vmul.f32 %v546, %v548
        %v550 = vadd.f32 %v546, %v549
        %vm551 = vweird.f32 %v545
        %vm552 = vweird.f32 %v546
        %vm553 = vmor %vm551, %vm552
        %v554 = vsel %vm553, %v546, %v550
        %v555 = vand.u32 2147483647, %v545
        %vm556 = vcmp.eq.f32.partialorder %v555, 8.507059e+37
        %v557 = vand.u32 %v545, 2147483648
        %v558 = vor.u32 1.1754944e-38, %v557
        %v559 = vsel %vm556, %v558, %v554
        %v560 = vmul.f32 1.0, %v559
        %v561 = vtanh.pop %v541
        %v562 = vmul.f32 %v560, %v505
        %564 = vrot.lane.b32.xlu0 %v561, 64
        %v565 = vpop.permute.xlu0 %564
        %v567 = vmul.f32 %v560, %v565
        %569 = vrot.lane.b32.xlu0 %v567, 32
        %v570 = vpop.permute.xlu0 %569
        %v572 = vadd.f32 %v562, %v570
        %v573 = vtanh.pop %v572
        %575 = vrot.lane.b32.xlu0 %v573, 64
        %v576 = vpop.permute.xlu0 %575
        %v578 = vmul.f32 %v560, %v576
        %580 = vrot.lane.b32.xlu0 %v578, 32
        %v581 = vpop.permute.xlu0 %580
        %s583 = scalar_lea.vmem [#allocation3], 8
        %584 = vst.msk [vmem:[%s583] sm:$0xff] %vm446, %v581
        %s585 = scalar_lea.vmem [#allocation2], 16
        %v586 = vld [vmem:[%s585] sm:$0xff]
        %v587 = vsel %vm446, %v581, 0
        %589 = vmatpush.msra.mxu0 0.0
        %590 = vmatpush.msra.mxu0 0.0
        %591 = vmatpush.msra.mxu0 0.0
        %592 = vmatpush.msra.mxu0 0.0
        %593 = vmatpush.msra.mxu0 0.0
        %594 = vmatpush.msra.mxu0 0.0
        %595 = vmatpush.msra.mxu0 0.0
        %596 = vmatpush.msra.mxu0 0.0
        %597 = vmatpush.msra.mxu0 0.0
        %598 = vmatpush.msra.mxu0 0.0
        %599 = vmatpush.msra.mxu0 0.0
        %600 = vmatpush.msra.mxu0 0.0
        %601 = vmatpush.msra.mxu0 %v442
        %602 = vmatpush.msra.mxu0 %v441
        %603 = vmatpush.msra.mxu0 %v440
        %604 = vmatpush.msra.mxu0 %v439
        %605 = vmatmul.f32.gmra.mxu0 %v587
        %v606 = vpop.f32.mrf.mxu0
        %v607 = vadd.f32 0.0, %v606
        %608 = vdwg.mxu0
        %v609 = vadd.f32 %v586, %v607
        %v610 = vxor.u32 %v609, 2147483648
        %v611 = vmul.f32 %v610, 1.442695
        %v612 = vpow.pop %v611
        %v613 = vadd.f32 %v612, 1.0
        %v614 = vrcp.pop %v613
        %v615 = vmul.f32 %v613, %v614
        %v616 = vsub.f32 1.0, %v615
        %v617 = vmul.f32 %v614, %v616
        %v618 = vadd.f32 %v614, %v617
        %vm619 = vweird.f32 %v613
        %vm620 = vweird.f32 %v614
        %vm621 = vmor %vm619, %vm620
        %v622 = vsel %vm621, %v614, %v618
        %v623 = vand.u32 2147483647, %v613
        %vm624 = vcmp.eq.f32.partialorder %v623, 8.507059e+37
        %v625 = vand.u32 %v613, 2147483648
        %v626 = vor.u32 1.1754944e-38, %v625
        %v627 = vsel %vm624, %v626, %v622
        %v628 = vmul.f32 1.0, %v627
        %v629 = vtanh.pop %v609
        %v630 = vmul.f32 %v628, %v572
        %632 = vrot.lane.b32.xlu0 %v629, 64
        %v633 = vpop.permute.xlu0 %632
        %v635 = vmul.f32 %v628, %v633
        %637 = vrot.lane.b32.xlu0 %v635, 32
        %v638 = vpop.permute.xlu0 %637
        %v640 = vadd.f32 %v630, %v638
        %v641 = vtanh.pop %v640
        %643 = vrot.lane.b32.xlu0 %v641, 64
        %v644 = vpop.permute.xlu0 %643
        %v646 = vmul.f32 %v628, %v644
        %648 = vrot.lane.b32.xlu0 %v646, 32
        %v649 = vpop.permute.xlu0 %648
        %s651 = scalar_lea.vmem [#allocation3], 16
        %652 = vst.msk [vmem:[%s651] sm:$0xff] %vm446, %v649
        %s653 = scalar_lea.vmem [#allocation2], 24
        %v654 = vld [vmem:[%s653] sm:$0xff]
        %v655 = vsel %vm446, %v649, 0
        %657 = vmatpush.msra.mxu0 0.0
        %658 = vmatpush.msra.mxu0 0.0
        %659 = vmatpush.msra.mxu0 0.0
        %660 = vmatpush.msra.mxu0 0.0
        %661 = vmatpush.msra.mxu0 0.0
        %662 = vmatpush.msra.mxu0 0.0
        %663 = vmatpush.msra.mxu0 0.0
        %664 = vmatpush.msra.mxu0 0.0
        %665 = vmatpush.msra.mxu0 0.0
        %666 = vmatpush.msra.mxu0 0.0
        %667 = vmatpush.msra.mxu0 0.0
        %668 = vmatpush.msra.mxu0 0.0
        %669 = vmatpush.msra.mxu0 %v442
        %670 = vmatpush.msra.mxu0 %v441
        %671 = vmatpush.msra.mxu0 %v440
        %672 = vmatpush.msra.mxu0 %v439
        %673 = vmatmul.f32.gmra.mxu0 %v655
        %v674 = vpop.f32.mrf.mxu0
        %v675 = vadd.f32 0.0, %v674
        %676 = vdwg.mxu0
        %v677 = vadd.f32 %v654, %v675
        %v678 = vxor.u32 %v677, 2147483648
        %v679 = vmul.f32 %v678, 1.442695
        %v680 = vpow.pop %v679
        %v681 = vadd.f32 %v680, 1.0
        %v682 = vrcp.pop %v681
        %v683 = vmul.f32 %v681, %v682
        %v684 = vsub.f32 1.0, %v683
        %v685 = vmul.f32 %v682, %v684
        %v686 = vadd.f32 %v682, %v685
        %vm687 = vweird.f32 %v681
        %vm688 = vweird.f32 %v682
        %vm689 = vmor %vm687, %vm688
        %v690 = vsel %vm689, %v682, %v686
        %v691 = vand.u32 2147483647, %v681
        %vm692 = vcmp.eq.f32.partialorder %v691, 8.507059e+37
        %v693 = vand.u32 %v681, 2147483648
        %v694 = vor.u32 1.1754944e-38, %v693
        %v695 = vsel %vm692, %v694, %v690
        %v696 = vmul.f32 1.0, %v695
        %v697 = vtanh.pop %v677
        %v698 = vmul.f32 %v696, %v640
        %700 = vrot.lane.b32.xlu0 %v697, 64
        %v701 = vpop.permute.xlu0 %700
        %v703 = vmul.f32 %v696, %v701
        %705 = vrot.lane.b32.xlu0 %v703, 32
        %v706 = vpop.permute.xlu0 %705
        %v708 = vadd.f32 %v698, %v706
        %v709 = vtanh.pop %v708
        %711 = vrot.lane.b32.xlu0 %v709, 64
        %v712 = vpop.permute.xlu0 %711
        %v714 = vmul.f32 %v696, %v712
        %716 = vrot.lane.b32.xlu0 %v714, 32
        %v717 = vpop.permute.xlu0 %716
        %s719 = scalar_lea.vmem [#allocation3], 24
        %720 = vst.msk [vmem:[%s719] sm:$0xff] %vm446, %v717
        %721 = vst.msk [vmem:[#allocation4] sm:$0xff] %vm446, %v717
        %723 = vrot.lane.b32.xlu0 %v708, 96
        %v724 = vpop.permute.xlu0 %723
        %726 = vst.msk [vmem:[#allocation5] sm:$0xff] %vm446, %v724
        %v727 = vld [vmem:[#allocation3] sm:$0xff]
        %v728 = vld [vmem:[#allocation3 + $0x8] sm:$0xff]
        %v729 = vld [vmem:[#allocation3 + $0x10] sm:$0xff]
        %v730 = vld [vmem:[#allocation3 + $0x18] sm:$0xff]
        %v731 = vpack.c.bf16 %v728, %v727
        %v732 = vpack.c.bf16 %v730, %v729
        %v733 = vld [vmem:[%s6] sm:$0xf]
        %v734 = vld [vmem:[%s6 + $0x4] sm:$0xf]
        %v735 = vld [vmem:[%s6 + $0x8] sm:$0xf]
        %v736 = vld [vmem:[%s6 + $0xc] sm:$0xf]
        %v737 = vld [vmem:[%s7] sm:$0x1]
        %v739 = vperm.slane %v737, 0
        %v745 = vunpack.c.l.b16 %v733
        %v746 = vunpack.c.l.b16 %v734
        %v747 = vunpack.c.l.b16 %v735
        %v748 = vunpack.c.l.b16 %v736
        %v749 = vpack.c.b16 %v746, %v745
        %v750 = vpack.c.b16 %v748, %v747
        %v754 = vsel %vm446, %v731, 0
        %v757 = vsel %vm446, %v732, 0
        %759 = vmatpush.bf16.msra.mxu0 0
        %760 = vmatpush.bf16.msra.mxu0 0
        %761 = vmatpush.bf16.msra.mxu0 0
        %762 = vmatpush.bf16.msra.mxu0 0
        %763 = vmatpush.bf16.msra.mxu0 0
        %764 = vmatpush.bf16.msra.mxu0 0
        %765 = vmatpush.bf16.msra.mxu0 %v750
        %766 = vmatpush.bf16.msra.mxu0 %v749
        %767 = vmatmul.bf16.gmra.mxu0 %v754
        %v768 = vpop.f32.mrf.mxu0
        %v769 = vadd.f32 %v739, %v768
        %v770 = vpop.f32.mrf.mxu0
        %v771 = vadd.f32 %v739, %v770
        %772 = vmatmul.bf16.gmra.mxu0 %v757
        %v773 = vpop.f32.mrf.mxu0
        %v774 = vadd.f32 %v739, %v773
        %v775 = vpop.f32.mrf.mxu0
        %v776 = vadd.f32 %v739, %v775
        %777 = vdwg.mxu0
        %778 = vst [vmem:[%s315] sm:$0xff] %v769
        %779 = vst [vmem:[%s315 + $0x8] sm:$0xff] %v771
        %780 = vst [vmem:[%s315 + $0x10] sm:$0xff] %v774
        %781 = vst [vmem:[%s315 + $0x18] sm:$0xff] %v776
        %s782 = sand.u32 %s208, 1
        %s783 = scalar_lea.sflag [#allocation7], %s782
        %s784 = sand.u32 %s208, 1
        %s785 = smul.addr %s784, 32
        %s786 = scalar_lea.vmem [#allocation6], %s785
        // Predicated region
        $region57: #{tpu_custom_call.1} parent=51 // pred_check
          %p787 = pneg %p218
        $region58: #{tpu_custom_call.1} parent=51 // pred_check_branch
          %789 = sbr.rel (%p787) target = $region60
        $region59: #{tpu_custom_call.1} parent=51 // pred_region
          %s790 = smul.u32 4, %s22
          %792 = vsyncadd %s783, 0
          %s793 = smul.addr %s790, 8
          %s794 = scalar_lea.hbm %s8, %s793
          %s795 = sshll.u32 %s786, 4
          %s796 = int_to_ptr.vmem [resolvable:$true] %s795
          %s797 = sshll.u32 %s794, 4
          %s798 = int_to_ptr.hbm [resolvable:$true] %s797
          %803 = dma.vmem_to_hbm [thread:$0]  %s796, 512, %s798, %s783, 128, 128, 8
        $region60: #{tpu_custom_call.1} parent=51 // pred_fallthru
          _
      $region52: #{tpu_custom_call.1} parent=5 // pred_fallthru
        _
      %p804 = scmp.le.s32.totalorder 2, %s17
      // Predicated region
      $region61: #{tpu_custom_call.1} parent=5 // pred_check
        %p805 = pneg %p804
      $region62: #{tpu_custom_call.1} parent=5 // pred_check_branch
        %807 = sbr.rel (%p805) target = $region64
      $region63: #{tpu_custom_call.1} parent=5 // pred_region
        %s808 = ssub.s32 %s17, 2
        // Predicated region
        $region65: #{tpu_custom_call.1} parent=63 // pred_check
          %p809 = pneg %p224
        $region66: #{tpu_custom_call.1} parent=63 // pred_check_branch
          %811 = sbr.rel (%p809) target = $region68
        $region67: #{tpu_custom_call.1} parent=63 // pred_region
          %s812 = sand.u32 %s209, 1
          %s813 = scalar_lea.sflag [#allocation7], %s812
          %s814 = sand.u32 %s209, 1
          %s815 = smul.addr %s814, 32
          %s816 = scalar_lea.vmem [#allocation6], %s815
          %818 = dma.done %s813, 512
        $region68: #{tpu_custom_call.1} parent=63 // pred_fallthru
          _
      $region64: #{tpu_custom_call.1} parent=5 // pred_fallthru
        _
    $region6: #{tpu_custom_call.1} parent=1 // loop_footer
      %s21 = sadd.s32 1, %s17
    $region7: #{tpu_custom_call.1} parent=1 // loop_footer_branch
      %16 = sbr.rel target = $region3
    $region8: #{tpu_custom_call.1} parent=1 // loop_exit
      _
    %819 = vsyncpa [#allocation7], 1
    %s820 = scalar_lea.sflag [#allocation7], 1
    %821 = vsyncpa %s820, 1

</llo_original>
